<compile_context>
chip_gen: v7x
topology: tpu7x:2x2x1
jax: 0.10.0
libtpu: 0.0.40
codegen_flags: <defaults>
</compile_context>

<pallas_src>
import functools

import jax
import jax.numpy as jnp
from jax.experimental import pallas as pl
from jax.experimental.pallas import tpu as pltpu

DIM = 6            # model dim from the PyTorch module
PD = 8             # DIM padded up to the 8-sublane tile
DEFAULT_TM = 8192  # lane-axis tile (multiple of 128); ~256 KiB f32 per block


def _mlp_kernel(wc_ref, xt_ref, ot_ref):
    # Lane-dense formulation: y.T = Wc @ x.T with Wc = W4 @ W3 @ W2 @ W1
    # (folded in the wrapper).  One tiny MXU dot per tile; the kernel is
    # memory-bound and the lane axis (M) is fully dense for loads/stores.
    ot_ref[...] = jnp.dot(wc_ref[...], xt_ref[...],
                          preferred_element_type=jnp.float32)


def _round_up(a, b):
    return ((a + b - 1) // b) * b


@functools.partial(jax.jit, static_argnames=("tm",))
def model_parallel_forward(x, w1, w2, w3, w4, *, tm=DEFAULT_TM):
    """x: (..., DIM) float32. Returns the same shape (4-layer linear chain)."""
    orig_shape = x.shape
    x2d = x.reshape(-1, orig_shape[-1]).astype(jnp.float32)
    M = x2d.shape[0]

    # Fold the 4-layer chain once, outside the kernel:
    #   y = x @ (W1.T W2.T W3.T W4.T)   <=>   y.T = (W4 W3 W2 W1) @ x.T
    wc = w4 @ w3 @ w2 @ w1                                         # (DIM, DIM)
    wc_pad = jnp.zeros((PD, PD), jnp.float32).at[:DIM, :DIM].set(wc)

    # Lane-dense layout: M rides the 128-lane axis; DIM padded to 8 sublanes.
    # Pad M up to a multiple of the tile so every block is (8,128)-aligned.
    tm = min(tm, _round_up(M, 128))
    m_pad = _round_up(M, tm)
    xt = jnp.zeros((PD, m_pad), jnp.float32).at[:DIM, :M].set(x2d.T)

    out_t = pl.pallas_call(
        _mlp_kernel,
        out_shape=jax.ShapeDtypeStruct((PD, m_pad), jnp.float32),
        grid=(m_pad // tm,),
        in_specs=[
            pl.BlockSpec((PD, PD), lambda i: (0, 0)),   # folded weight, resident
            pl.BlockSpec((PD, tm), lambda i: (0, i)),   # x.T tile, double-buffered
        ],
        out_specs=pl.BlockSpec((PD, tm), lambda i: (0, i)),
        compiler_params=pltpu.CompilerParams(
            dimension_semantics=("parallel",)),
    )(wc_pad, xt)

    y2d = out_t[:DIM, :M].T
    return y2d.reshape(orig_shape)


def init_weights(key):
    """Deterministic init; mimics PyTorch's uniform(-1/sqrt(fan_in), 1/sqrt(fan_in))."""
    keys = jax.random.split(key, 4)
    bound = 1.0 / jnp.sqrt(jnp.float32(DIM))
    return tuple(
        jax.random.uniform(k, (DIM, DIM), jnp.float32, minval=-bound, maxval=bound)
        for k in keys
    )


if __name__ == "__main__":
    key = jax.random.PRNGKey(0)
    kx, kw = jax.random.split(key)

    # Small input consistent with the module: (batch=2, seq=8, dim=6)
    x = jax.random.normal(kx, (2, 8, DIM), dtype=jnp.float32)
    w1, w2, w3, w4 = init_weights(kw)

    y = model_parallel_forward(x, w1, w2, w3, w4)
    y = jax.block_until_ready(y)

    # Pure-JAX per-layer reference (unfused order) for sanity.
    ref = x
    for w in (w1, w2, w3, w4):
        ref = ref @ w.T
    assert y.shape == x.shape
    assert jnp.allclose(y, ref, atol=1e-5, rtol=1e-5), float(jnp.abs(y - ref).max())

    print("KERNEL_OK")
</pallas_src>

<mosaic_0001>
module attributes {stable_mosaic.version = 11 : i64} {
  func.func @_mlp_kernel(%arg0: i32, %arg1: memref<8x8xf32, #tpu.memory_space<vmem>>, %arg2: memref<8x128xf32, #tpu.memory_space<vmem>>, %arg3: memref<8x128xf32, #tpu.memory_space<vmem>>) attributes {dimension_semantics = [#tpu.dimension_semantics<parallel>], iteration_bounds = array<i64: 1>, scalar_prefetch = 0 : i64, scratch_operands = 0 : i64, tpu.core_type = #tpu.core_type<tc>, window_params = [{pipeline_mode = #tpu.pipeline_mode<synchronous>, transform_indices = @transform_0, window_bounds = array<i64: 8, 8>}, {transform_indices = @transform_1, window_bounds = array<i64: 8, 128>}, {transform_indices = @transform_2, window_bounds = array<i64: 8, 128>}]} {
    %c0 = arith.constant 0 : index
    %c0_0 = arith.constant 0 : index
    %0 = vector.load %arg1[%c0, %c0_0] : memref<8x8xf32, #tpu.memory_space<vmem>>, vector<8x8xf32>
    %c0_1 = arith.constant 0 : index
    %c0_2 = arith.constant 0 : index
    %1 = vector.load %arg2[%c0_1, %c0_2] : memref<8x128xf32, #tpu.memory_space<vmem>>, vector<8x128xf32>
    %cst = arith.constant dense<0.000000e+00> : vector<8x128xf32>
    %2 = tpu.matmul %0, %1, %cst {dimension_numbers = #tpu.dot_dimension_numbers<[1], [0], [0], [1], [0, 0, 1, 1], [], []>} : vector<8x8xf32>, vector<8x128xf32>, vector<8x128xf32> -> vector<8x128xf32>
    %c0_3 = arith.constant 0 : index
    %c0_4 = arith.constant 0 : index
    %3 = vector.load %arg3[%c0_3, %c0_4] : memref<8x128xf32, #tpu.memory_space<vmem>>, vector<8x128xf32>
    tpu.vector_store %arg3[%c0_3, %c0_4], %2 {strides = array<i32>} : memref<8x128xf32, #tpu.memory_space<vmem>>, vector<8x128xf32>,
    return
  }
  func.func @transform_0(%arg0: i32) -> (i32, i32) {
    %c0_i32 = arith.constant 0 : i32
    %c0_i32_0 = arith.constant 0 : i32
    %c0_i32_1 = arith.constant 0 : i32
    return %c0_i32, %c0_i32_0 : i32, i32
  }
  func.func @transform_1(%arg0: i32) -> (i32, i32) {
    %c0_i32 = arith.constant 0 : i32
    %c0_i32_0 = arith.constant 0 : i32
    return %c0_i32, %arg0 : i32, i32
  }
  func.func @transform_2(%arg0: i32) -> (i32, i32) {
    %c0_i32 = arith.constant 0 : i32
    %c0_i32_0 = arith.constant 0 : i32
    return %c0_i32, %arg0 : i32, i32
  }
}

</mosaic_0001>

<llo_original>
// kernel: model_parallel_forward.1
$region0: #{model_parallel_forward.1}
  #allocation0 [shape = 'u32[]', space=smem, size = 0x4, offset = 0x4, fixed_abs, tag = 'smem constant byte address 0x4 - core index']
  #allocation1 [shape = 'u32[144,128]{1,0:T(1,128)}', space=vmem, size = 0x12000, scoped, tag = 'internal scratch']
  %s0 = inlined_call_operand.vmem [shape: f32[8,8], index: 0, kind: input, shape index: {}]
  %s1 = inlined_call_operand.vmem [shape: f32[8,128], index: 1, kind: input, shape index: {}]
  %s2 = inlined_call_operand.vmem [shape: f32[8,128], index: 2, kind: output, shape index: {}]
  %s3 = sld [smem:[#allocation0]]
  $region18: #{model_parallel_forward.1} parent=0
    _
  %s5 = ssub.s32 1, %s3
  %s6 = scalar_select 0, %s5, %s3
  // Predicated region
  $region2: #{model_parallel_forward.1} parent=0 // pred_check
    _
  $region3: #{model_parallel_forward.1} parent=0 // pred_check_branch
    %8 = sbr.rel (0) target = $region5
  $region4: #{model_parallel_forward.1} parent=0 // pred_region
    _
  $region5: #{model_parallel_forward.1} parent=0 // pred_fallthru
    _
  // Predicated region
  $region6: #{model_parallel_forward.1} parent=0 // pred_check
    _
  $region7: #{model_parallel_forward.1} parent=0 // pred_check_branch
    %10 = sbr.rel (0) target = $region9
  $region8: #{model_parallel_forward.1} parent=0 // pred_region
    _
  $region9: #{model_parallel_forward.1} parent=0 // pred_fallthru
    _
  %v11 = vld [vmem:[%s0] sm:$0xff]
  %v12 = vld [vmem:[%s1] sm:$0xff]
  %vm13 = vcmask 64512
  %v15 = vsel %vm13, %v11, 0
  %17 = vmatprep.subr.mxu0 0.0
  %18 = vmatpush1.msra.mxu0 %v12
  %19 = vmatprep.subr.mxu0 0.0
  %20 = vmatpush1.msra.mxu0 0.0
  %21 = vmatprep.subr.mxu0 0.0
  %22 = vmatpush1.msra.mxu0 0.0
  %23 = vmatprep.subr.mxu0 0.0
  %24 = vmatpush1.msra.mxu0 0.0
  %25 = vmatprep.subr.mxu0 0.0
  %26 = vmatpush1.msra.mxu0 0.0
  %27 = vmatprep.subr.mxu0 0.0
  %28 = vmatpush1.msra.mxu0 0.0
  %29 = vmatprep.subr.mxu0 0.0
  %30 = vmatpush1.msra.mxu0 0.0
  %31 = vmatprep.subr.mxu0 0.0
  %32 = vmatpush1.msra.mxu0 0.0
  %33 = vmatprep.subr.mxu0 0.0
  %34 = vmatpush1.msra.mxu0 0.0
  %35 = vmatprep.subr.mxu0 0.0
  %36 = vmatpush1.msra.mxu0 0.0
  %37 = vmatprep.subr.mxu0 0.0
  %38 = vmatpush1.msra.mxu0 0.0
  %39 = vmatprep.subr.mxu0 0.0
  %40 = vmatpush1.msra.mxu0 0.0
  %41 = vmatprep.subr.mxu0 0.0
  %42 = vmatpush1.msra.mxu0 0.0
  %43 = vmatprep.subr.mxu0 0.0
  %44 = vmatpush1.msra.mxu0 0.0
  %45 = vmatprep.subr.mxu0 0.0
  %46 = vmatpush1.msra.mxu0 0.0
  %47 = vmatprep.subr.mxu0 0.0
  %48 = vmatpush1.msra.mxu0 0.0
  %49 = vmatprep.subr.mxu0 0.0
  %50 = vmatpush1.msra.mxu0 0.0
  %51 = vmatprep.subr.mxu0 0.0
  %52 = vmatpush1.msra.mxu0 0.0
  %53 = vmatprep.subr.mxu0 0.0
  %54 = vmatpush1.msra.mxu0 0.0
  %55 = vmatprep.subr.mxu0 0.0
  %56 = vmatpush1.msra.mxu0 0.0
  %57 = vmatprep.subr.mxu0 0.0
  %58 = vmatpush1.msra.mxu0 0.0
  %59 = vmatprep.subr.mxu0 0.0
  %60 = vmatpush1.msra.mxu0 0.0
  %61 = vmatprep.subr.mxu0 0.0
  %62 = vmatpush1.msra.mxu0 0.0
  %63 = vmatprep.subr.mxu0 0.0
  %64 = vmatpush1.msra.mxu0 0.0
  %65 = vmatprep.subr.mxu0 0.0
  %66 = vmatpush1.msra.mxu0 0.0
  %67 = vmatprep.subr.mxu0 0.0
  %68 = vmatpush1.msra.mxu0 0.0
  %69 = vmatprep.subr.mxu0 0.0
  %70 = vmatpush1.msra.mxu0 0.0
  %71 = vmatprep.subr.mxu0 0.0
  %72 = vmatpush1.msra.mxu0 0.0
  %73 = vmatprep.subr.mxu0 0.0
  %74 = vmatpush1.msra.mxu0 0.0
  %75 = vmatprep.subr.mxu0 0.0
  %76 = vmatpush1.msra.mxu0 0.0
  %77 = vmatprep.subr.mxu0 0.0
  %78 = vmatpush1.msra.mxu0 0.0
  %79 = vmatprep.subr.mxu0 0.0
  %80 = vmatpush1.msra.mxu0 0.0
  %81 = vmatprep.mubr.f32.mxu0 0.0
  %82 = vmatmul.mubr.f32.gmra.mrb[0].mxu0 %v15
  %v83 = vpop.f32.mrb[0].mxu0
  %v84 = vadd.f32 0.0, %v83
  %v85 = vpop.f32.mrb[0].mxu0
  %86 = vdwg.mxu0
  %87 = vst [vmem:[%s2] sm:$0xff] %v84
  // Predicated region
  $region10: #{model_parallel_forward.1} parent=0 // pred_check
    _
  $region11: #{model_parallel_forward.1} parent=0 // pred_check_branch
    %89 = sbr.rel (0) target = $region13
  $region12: #{model_parallel_forward.1} parent=0 // pred_region
    _
  $region13: #{model_parallel_forward.1} parent=0 // pred_fallthru
    _
  // Predicated region
  $region14: #{model_parallel_forward.1} parent=0 // pred_check
    _
  $region15: #{model_parallel_forward.1} parent=0 // pred_check_branch
    %91 = sbr.rel (0) target = $region17
  $region16: #{model_parallel_forward.1} parent=0 // pred_region
    _
  $region17: #{model_parallel_forward.1} parent=0 // pred_fallthru
    _

</llo_original>
